<compile_context>
chip_gen: v6e
topology: v6e:2x2x1
jax: 0.10.0
libtpu: 0.0.40
codegen_flags: <defaults>
</compile_context>

<pallas_src>
import jax
import jax.numpy as jnp
from jax.experimental import pallas as pl
from jax.experimental.pallas import tpu as pltpu

LANE = 128


def _round_up(a, b):
    return (a + b - 1) // b * b


def mlp_kernel(x_ref, p_ref, o_ref):
    """Tiny-MLP forward on the VPU/EUP.

    x_ref : (2, TR, 128) f32 VMEM  -- feature-major, batch on sublanes+lanes
    p_ref : (5,)        f32 SMEM   -- [w1_00, w1_01, b1, w2_00, b2]
    o_ref : (TR, 128)   f32 VMEM   -- sigmoid output
    """
    w10 = p_ref[0]
    w11 = p_ref[1]
    b1 = p_ref[2]
    w2 = p_ref[3]
    b2 = p_ref[4]

    x0 = x_ref[0]                             # (TR, 128)
    x1 = x_ref[1]                             # (TR, 128)

    z1 = x0 * w10 + x1 * w11 + b1             # Linear(2 -> 1), unrolled (VPU)
    a1 = jnp.maximum(z1, 0.0)                 # ReLU
    z2 = a1 * w2 + b2                         # Linear(1 -> 1)
    o_ref[...] = jax.nn.sigmoid(z2)           # Sigmoid (EUP)


def mlp_forward(x, params, *, tile_rows=512):
    """x: (B, 2) f32, params: (5,) f32 packed [w1_00, w1_01, b1, w2_00, b2].

    Returns (B, 1) f32, matching the torch module's forward.
    """
    B = x.shape[0]
    rows = pl.cdiv(B, LANE)                       # number of 128-wide rows
    tr = _round_up(min(tile_rows, _round_up(rows, 8)), 8)
    rows_pad = _round_up(rows, tr)
    b_pad = rows_pad * LANE

    if b_pad != B:
        x = jnp.concatenate(
            [x, jnp.zeros((b_pad - B, x.shape[1]), x.dtype)], axis=0)

    # Single deinterleave pass; the reshapes below are free (contiguous).
    x_fm = x.T.reshape(2, rows_pad, LANE)         # feature-major, lane-dense

    grid = (rows_pad // tr,)
    y = pl.pallas_call(
        mlp_kernel,
        out_shape=jax.ShapeDtypeStruct((rows_pad, LANE), jnp.float32),
        grid=grid,
        in_specs=[
            pl.BlockSpec((2, tr, LANE), lambda i: (0, i, 0)),          # x tile
            pl.BlockSpec(memory_space=pltpu.MemorySpace.SMEM),         # params
        ],
        out_specs=pl.BlockSpec((tr, LANE), lambda i: (i, 0)),
        compiler_params=pltpu.CompilerParams(
            dimension_semantics=("parallel",)),
    )(x_fm, params)

    return y.reshape(-1)[:B].reshape(B, 1)


def init_params(key, in_features=2, hidden_size=1, output_size=1):
    """torch.nn.Linear default init: U(-1/sqrt(fan_in), 1/sqrt(fan_in)).

    Returns packed (5,) f32: [w1_00, w1_01, b1, w2_00, b2]
    (valid only for hidden_size == output_size == 1).
    """
    assert hidden_size == 1 and output_size == 1
    k1, k2, k3, k4 = jax.random.split(key, 4)
    bound1 = 1.0 / jnp.sqrt(in_features)
    bound2 = 1.0 / jnp.sqrt(hidden_size)
    w1 = jax.random.uniform(k1, (in_features, hidden_size), jnp.float32,
                            -bound1, bound1)
    b1 = jax.random.uniform(k2, (hidden_size,), jnp.float32, -bound1, bound1)
    w2 = jax.random.uniform(k3, (hidden_size, output_size), jnp.float32,
                            -bound2, bound2)
    b2 = jax.random.uniform(k4, (output_size,), jnp.float32, -bound2, bound2)
    return jnp.concatenate([w1.ravel(), b1.ravel(), w2.ravel(), b2.ravel()])


def _reference(x, params):
    w1 = params[0:2].reshape(2, 1)
    b1 = params[2]
    w2 = params[3]
    b2 = params[4]
    return jax.nn.sigmoid(jnp.maximum(x @ w1 + b1, 0.0) * w2 + b2)


if __name__ == "__main__":
    key = jax.random.PRNGKey(0)
    kx1, kx2, kp = jax.random.split(key, 3)
    params = init_params(kp)

    # Case 1: batch multiple of 128, small tile -> multi-step parallel grid.
    x1 = jax.random.normal(kx1, (2048, 2), jnp.float32)
    y1 = jax.block_until_ready(mlp_forward(x1, params, tile_rows=8))
    assert y1.shape == (2048, 1)
    assert jnp.allclose(y1, _reference(x1, params), atol=1e-6)

    # Case 2: ragged batch -> exercises the zero-pad + slice path.
    x2 = jax.random.normal(kx2, (300, 2), jnp.float32)
    y2 = jax.block_until_ready(mlp_forward(x2, params))
    assert y2.shape == (300, 1)
    assert jnp.allclose(y2, _reference(x2, params), atol=1e-6)

    print("KERNEL_OK")
</pallas_src>

<mosaic_0001>
module attributes {stable_mosaic.version = 11 : i64} {
  func.func @mlp_kernel(%arg0: i32, %arg1: memref<2x8x128xf32, #tpu.memory_space<vmem>>, %arg2: memref<5xf32, #tpu.memory_space<smem>>, %arg3: memref<8x128xf32, #tpu.memory_space<vmem>>) attributes {dimension_semantics = [#tpu.dimension_semantics<parallel>], iteration_bounds = array<i64: 2>, scalar_prefetch = 0 : i64, scratch_operands = 0 : i64, tpu.core_type = #tpu.core_type<tc>, window_params = [{transform_indices = @transform_0, window_bounds = array<i64: 2, 8, 128>}, {transform_indices = @transform_1, window_bounds = array<i64: 5>}, {transform_indices = @transform_2, window_bounds = array<i64: 8, 128>}]} {
    %c0 = arith.constant 0 : index
    %0 = memref.load %arg2[%c0] : memref<5xf32, #tpu.memory_space<smem>>
    %c1 = arith.constant 1 : index
    %1 = memref.load %arg2[%c1] : memref<5xf32, #tpu.memory_space<smem>>
    %c2 = arith.constant 2 : index
    %2 = memref.load %arg2[%c2] : memref<5xf32, #tpu.memory_space<smem>>
    %c3 = arith.constant 3 : index
    %3 = memref.load %arg2[%c3] : memref<5xf32, #tpu.memory_space<smem>>
    %c4 = arith.constant 4 : index
    %4 = memref.load %arg2[%c4] : memref<5xf32, #tpu.memory_space<smem>>
    %c0_0 = arith.constant 0 : index
    %c0_1 = arith.constant 0 : index
    %c0_2 = arith.constant 0 : index
    %5 = vector.load %arg1[%c0_0, %c0_1, %c0_2] : memref<2x8x128xf32, #tpu.memory_space<vmem>>, vector<1x8x128xf32>
    %6 = vector.shape_cast %5 : vector<1x8x128xf32> to vector<8x128xf32>
    %c1_3 = arith.constant 1 : index
    %c0_4 = arith.constant 0 : index
    %c0_5 = arith.constant 0 : index
    %7 = vector.load %arg1[%c1_3, %c0_4, %c0_5] : memref<2x8x128xf32, #tpu.memory_space<vmem>>, vector<1x8x128xf32>
    %8 = vector.shape_cast %7 : vector<1x8x128xf32> to vector<8x128xf32>
    %9 = vector.broadcast %0 : f32 to vector<8x128xf32>
    %10 = arith.mulf %6, %9 : vector<8x128xf32>
    %11 = vector.broadcast %1 : f32 to vector<8x128xf32>
    %12 = arith.mulf %8, %11 : vector<8x128xf32>
    %13 = arith.addf %10, %12 : vector<8x128xf32>
    %14 = vector.broadcast %2 : f32 to vector<8x128xf32>
    %15 = arith.addf %13, %14 : vector<8x128xf32>
    %cst = arith.constant 0.000000e+00 : f32
    %16 = vector.broadcast %cst : f32 to vector<8x128xf32>
    %17 = arith.maximumf %15, %16 : vector<8x128xf32>
    %18 = vector.broadcast %3 : f32 to vector<8x128xf32>
    %19 = arith.mulf %17, %18 : vector<8x128xf32>
    %20 = vector.broadcast %4 : f32 to vector<8x128xf32>
    %21 = arith.addf %19, %20 : vector<8x128xf32>
    %22 = arith.negf %21 : vector<8x128xf32>
    %23 = math.exp %22 : vector<8x128xf32>
    %cst_6 = arith.constant 1.000000e+00 : f32
    %24 = vector.broadcast %cst_6 : f32 to vector<8x128xf32>
    %25 = arith.addf %24, %23 : vector<8x128xf32>
    %26 = arith.divf %24, %25 : vector<8x128xf32>
    %c0_7 = arith.constant 0 : index
    %c0_8 = arith.constant 0 : index
    %27 = vector.load %arg3[%c0_7, %c0_8] : memref<8x128xf32, #tpu.memory_space<vmem>>, vector<8x128xf32>
    tpu.vector_store %arg3[%c0_7, %c0_8], %26 {strides = array<i32>} : memref<8x128xf32, #tpu.memory_space<vmem>>, vector<8x128xf32>,
    return
  }
  func.func @transform_0(%arg0: i32) -> (i32, i32, i32) {
    %c0_i32 = arith.constant 0 : i32
    %c0_i32_0 = arith.constant 0 : i32
    %c0_i32_1 = arith.constant 0 : i32
    return %c0_i32, %arg0, %c0_i32_0 : i32, i32, i32
  }
  func.func @transform_1(%arg0: i32) -> i32 {
    %c0_i32 = arith.constant 0 : i32
    %c0_i32_0 = arith.constant 0 : i32
    return %c0_i32 : i32
  }
  func.func @transform_2(%arg0: i32) -> (i32, i32) {
    %c0_i32 = arith.constant 0 : i32
    %c0_i32_0 = arith.constant 0 : i32
    return %arg0, %c0_i32 : i32, i32
  }
}

</mosaic_0001>

<llo_original>
// kernel: tpu_custom_call.1
$region0: #{tpu_custom_call.1}
  #allocation0 [shape = 'u32[]', space=smem, size = 0x4, offset = 0x4, fixed_abs, tag = 'smem constant byte address 0x4 - core index']
  #allocation1 [shape = 'u32[144,128]{1,0:T(1,128)}', space=vmem, size = 0x12000, scoped, tag = 'internal scratch']
  %s0 = inlined_call_operand.hbm [shape: f32[2,16,128], index: 0, kind: input, shape index: {}]
  %s1 = inlined_call_operand.vmem [shape: f32[5], index: 1, kind: input, shape index: {}]
  %s2 = inlined_call_operand.hbm [shape: f32[16,128], index: 2, kind: output, shape index: {}]
  %s3 = sld [smem:[#allocation0]]
  $region49: #{tpu_custom_call.1} parent=0
    _
  %s5 = ssub.s32 1, %s3
  %s6 = scalar_select 0, %s5, %s3
  $region1: #{tpu_custom_call.1} parent=0
    #allocation2 [shape = 'u8[16384]{0}', space=vmem, size = 0x4000, scoped, tag = 'input window, operand 0']
    #allocation3 [shape = 's32[2]{0}', space=sflag, size = 0x8, scoped, tag = 'scoped memory for tpu_custom_call.1']
    #allocation4 [shape = 's32[2]{0}', space=sflag, size = 0x8, scoped, tag = 'scoped memory for tpu_custom_call.1']
    #allocation5 [shape = 's32[2]{0}', space=sflag, size = 0x8, scoped, tag = 'scoped memory for tpu_custom_call.1']
    #allocation6 [shape = 'u8[512]{0}', space=smem, size = 0x200, scoped, tag = 'input window, operand 1, single buffered']
    #allocation7 [shape = 'u8[8192]{0}', space=vmem, size = 0x2000, scoped, tag = 'output window, operand 0']
    %7 = vsyncpa [#allocation3], 0
    %s8 = scalar_lea.sflag [#allocation3], 1
    %9 = vsyncpa %s8, 0
    %10 = vsyncpa [#allocation5], 0
    %11 = vsyncpa [#allocation4], 0
    %s12 = scalar_lea.sflag [#allocation4], 1
    %13 = vsyncpa %s12, 0
    loop: start=0, step=1, limit=4
    $region2: #{tpu_custom_call.1} parent=1 // loop_pre_header
      _
    $region3: #{tpu_custom_call.1} parent=1 // loop_header
      %s15 = sphi 0, %s19
      %p16 = scmp.ge.s32.totalorder %s15, 4
      %s25 = sphi 0, %s27
      %s28 = sphi 0, %s25
      %s29 = sphi 0, %s28
      %s45 = sphi 0, %s29
      %s49 = sphi 0, %s49
      %s51 = sphi 0, %s49
      %s52 = sphi 0, %s51
      %s66 = sphi 0, %s52
      %s72 = sphi 0, %s74
      %s75 = sphi 0, %s72
      %s76 = sphi 0, %s75
      %s92 = sphi 0, %s76
    $region4: #{tpu_custom_call.1} parent=1 // loop_header_branch
      %18 = sbr.rel (%p16) target = $region8
    $region5: #{tpu_custom_call.1} parent=1 // loop_body
      %s20 = ssub.s32 %s15, 1
      %s21 = ssub.s32 %s15, 2
      %s22 = sadd.s32 %s15, 1
      %s23 = ssub.s32 %s15, %s22
      %p24 = scmp.eq.s32.totalorder %s23, 0
      %s26 = sadd.s32 %s25, 1
      %s27 = scalar_select %p24, %s25, %s26
      %p30 = pneg %p24
      %p31 = scmp.eq.s32.totalorder %s15, 1
      %p32 = por %p30, %p31
      %p33 = scmp.ne.s32.totalorder %s25, %s28
      %p34 = scmp.eq.s32.totalorder %s15, 0
      %p35 = por %p33, %p34
      %p36 = scmp.ne.s32.totalorder %s25, %s28
      %p37 = scmp.eq.s32.totalorder %s20, 1
      %p38 = por %p36, %p37
      %p39 = scmp.ne.s32.totalorder %s28, %s29
      %p40 = scmp.eq.s32.totalorder %s20, 0
      %p41 = por %p39, %p40
      %p42 = scmp.ne.s32.totalorder %s28, %s29
      %p43 = scmp.eq.s32.totalorder %s21, 1
      %p44 = por %p42, %p43
      %p46 = scmp.ne.s32.totalorder %s29, %s45
      %p47 = scmp.eq.s32.totalorder %s21, 0
      %p48 = por %p46, %p47
      %s50 = sadd.s32 %s49, 1
      %p53 = scmp.eq.s32.totalorder %s15, 1
      %p54 = scmp.ne.s32.totalorder %s49, %s51
      %p55 = scmp.eq.s32.totalorder %s15, 0
      %p56 = por %p54, %p55
      %p57 = scmp.ne.s32.totalorder %s49, %s51
      %p58 = scmp.eq.s32.totalorder %s20, 1
      %p59 = por %p57, %p58
      %p60 = scmp.ne.s32.totalorder %s51, %s52
      %p61 = scmp.eq.s32.totalorder %s20, 0
      %p62 = por %p60, %p61
      %p63 = scmp.ne.s32.totalorder %s51, %s52
      %p64 = scmp.eq.s32.totalorder %s21, 1
      %p65 = por %p63, %p64
      %p67 = scmp.ne.s32.totalorder %s52, %s66
      %p68 = scmp.eq.s32.totalorder %s21, 0
      %p69 = por %p67, %p68
      %s70 = ssub.s32 %s15, %s22
      %p71 = scmp.eq.s32.totalorder %s70, 0
      %s73 = sadd.s32 %s72, 1
      %s74 = scalar_select %p71, %s72, %s73
      %p77 = pneg %p71
      %p78 = scmp.eq.s32.totalorder %s15, 1
      %p79 = por %p77, %p78
      %p80 = scmp.ne.s32.totalorder %s72, %s75
      %p81 = scmp.eq.s32.totalorder %s15, 0
      %p82 = por %p80, %p81
      %p83 = scmp.ne.s32.totalorder %s72, %s75
      %p84 = scmp.eq.s32.totalorder %s20, 1
      %p85 = por %p83, %p84
      %p86 = scmp.ne.s32.totalorder %s75, %s76
      %p87 = scmp.eq.s32.totalorder %s20, 0
      %p88 = por %p86, %p87
      %p89 = scmp.ne.s32.totalorder %s75, %s76
      %p90 = scmp.eq.s32.totalorder %s21, 1
      %p91 = por %p89, %p90
      %p93 = scmp.ne.s32.totalorder %s76, %s92
      %p94 = scmp.eq.s32.totalorder %s21, 0
      %p95 = por %p93, %p94
      %p96 = scmp.le.s32.totalorder 1, %s15
      %p97 = scmp.lt.s32.totalorder %s15, 3
      %p98 = pnand %p96, %p97
      %p99 = pneg %p98
      // Predicated region
      $region9: #{tpu_custom_call.1} parent=5 // pred_check
        _
      $region10: #{tpu_custom_call.1} parent=5 // pred_check_branch
        %101 = sbr.rel (%p98) target = $region12
      $region11: #{tpu_custom_call.1} parent=5 // pred_region
        %s102 = ssub.s32 %s15, 1
        // Predicated region
        $region13: #{tpu_custom_call.1} parent=11 // pred_check
          %p103 = pneg %p62
        $region14: #{tpu_custom_call.1} parent=11 // pred_check_branch
          %105 = sbr.rel (%p103) target = $region16
        $region15: #{tpu_custom_call.1} parent=11 // pred_region
          %s107 = ssub.s32 16, 16
          %108 = vsyncadd [#allocation5], %s107
          %s110 = sshll.u32 %s1, 4
          %s111 = int_to_ptr.vmem [resolvable:$true] %s110
          %113 = dma.vmem_to_smem %s111, 16, [#allocation6], [#allocation5]
        $region16: #{tpu_custom_call.1} parent=11 // pred_fallthru
          _
      $region12: #{tpu_custom_call.1} parent=5 // pred_fallthru
        _
      %p114 = scmp.lt.s32.totalorder %s15, 2
      // Predicated region
      $region17: #{tpu_custom_call.1} parent=5 // pred_check
        %p115 = pneg %p114
      $region18: #{tpu_custom_call.1} parent=5 // pred_check_branch
        %117 = sbr.rel (%p115) target = $region20
      $region19: #{tpu_custom_call.1} parent=5 // pred_region
        // Predicated region
        $region21: #{tpu_custom_call.1} parent=19 // pred_check
          %p118 = pneg %p35
        $region22: #{tpu_custom_call.1} parent=19 // pred_check_branch
          %120 = sbr.rel (%p118) target = $region24
        $region23: #{tpu_custom_call.1} parent=19 // pred_region
          %s121 = sand.u32 %s25, 1
          %s122 = scalar_lea.sflag [#allocation3], %s121
          %s123 = sand.u32 %s25, 1
          %s124 = smul.addr %s123, 16
          %s125 = scalar_lea.vmem [#allocation2], %s124
          %s127 = ssub.s32 256, 256
          %128 = vsyncadd %s122, %s127
          %s129 = smul.addr %s15, 128
          %s130 = scalar_lea.hbm %s0, %s129
          %s131 = sshll.u32 %s125, 4
          %s132 = int_to_ptr.vmem [resolvable:$true] %s131
          %137 = dma.hbm_to_vmem [thread:$0]  %s130, 256, %s132, %s122, 256, 128, 8
        $region24: #{tpu_custom_call.1} parent=19 // pred_fallthru
          _
      $region20: #{tpu_custom_call.1} parent=5 // pred_fallthru
        _
      %p138 = scmp.le.s32.totalorder 1, %s15
      %p139 = scmp.lt.s32.totalorder %s15, 3
      %p140 = pnand %p138, %p139
      %p141 = pneg %p140
      // Predicated region
      $region25: #{tpu_custom_call.1} parent=5 // pred_check
        _
      $region26: #{tpu_custom_call.1} parent=5 // pred_check_branch
        %143 = sbr.rel (%p140) target = $region28
      $region27: #{tpu_custom_call.1} parent=5 // pred_region
        %s144 = ssub.s32 %s15, 1
        %s145 = sand.u32 %s28, 1
        %s146 = scalar_lea.sflag [#allocation3], %s145
        %s147 = sand.u32 %s28, 1
        %s148 = smul.addr %s147, 16
        %s149 = scalar_lea.vmem [#allocation2], %s148
        // Predicated region
        $region29: #{tpu_custom_call.1} parent=27 // pred_check
          %p150 = pneg %p41
        $region30: #{tpu_custom_call.1} parent=27 // pred_check_branch
          %152 = sbr.rel (%p150) target = $region32
        $region31: #{tpu_custom_call.1} parent=27 // pred_region
          %153 = dma.done %s146, 256
        $region32: #{tpu_custom_call.1} parent=27 // pred_fallthru
          _
        // Predicated region
        $region33: #{tpu_custom_call.1} parent=27 // pred_check
          %p154 = pneg %p62
        $region34: #{tpu_custom_call.1} parent=27 // pred_check_branch
          %156 = sbr.rel (%p154) target = $region36
        $region35: #{tpu_custom_call.1} parent=27 // pred_region
          %157 = dma.done [#allocation5], 16
        $region36: #{tpu_custom_call.1} parent=27 // pred_fallthru
          _
        %158 = sfence
        %s159 = sand.u32 %s28, 1
        %s160 = scalar_lea.sflag [#allocation3], %s159
        %s161 = sand.u32 %s28, 1
        %s162 = smul.addr %s161, 16
        %s163 = scalar_lea.vmem [#allocation2], %s162
        %p164 = pneg %p41
        %p165 = pneg %p38
        %p166 = pneg %p62
        %p167 = pneg %p59
        %p168 = pneg %p88
        %p169 = pneg %p85
        %s170 = sand.u32 %s75, 1
        %s171 = scalar_lea.sflag [#allocation4], %s170
        %s172 = sand.u32 %s75, 1
        %s173 = smul.addr %s172, 8
        %s174 = scalar_lea.vmem [#allocation7], %s173
        %s175 = sld [smem:[#allocation6]]
        %s176 = sld [smem:[#allocation6 + $0x1]]
        %s177 = sld [smem:[#allocation6 + $0x2]]
        %s178 = sld [smem:[#allocation6 + $0x3]]
        %s179 = sld [smem:[#allocation6 + $0x4]]
        %v180 = vld [vmem:[%s149] sm:$0xff]
        %s181 = scalar_lea.vmem %s149, 8 [#allocation2]
        %v182 = vld [vmem:[%s181] sm:$0xff]
        %v183 = vstv %s175
        %v184 = vmul.f32 %v180, %v183
        %v185 = vstv %s176
        %v186 = vmul.f32 %v182, %v185
        %v187 = vadd.f32 %v184, %v186
        %v188 = vstv %s177
        %v189 = vadd.f32 %v187, %v188
        %v190 = vmax.f32 %v189, 0.0
        %v191 = vstv %s178
        %v192 = vmul.f32 %v190, %v191
        %v193 = vstv %s179
        %v194 = vadd.f32 %v192, %v193
        %v195 = vxor.u32 %v194, 2147483648
        %v196 = vmul.f32 %v195, 1.442695
        %v197 = vpow.pop %v196
        %v198 = vadd.f32 %v197, 1.0
        %v199 = vrcp.pop %v198
        %v200 = vmul.f32 1.0, %v199
        %201 = vst [vmem:[%s174] sm:$0xff] %v200
        %s202 = sand.u32 %s75, 1
        %s203 = scalar_lea.sflag [#allocation4], %s202
        %s204 = sand.u32 %s75, 1
        %s205 = smul.addr %s204, 8
        %s206 = scalar_lea.vmem [#allocation7], %s205
        // Predicated region
        $region37: #{tpu_custom_call.1} parent=27 // pred_check
          %p207 = pneg %p85
        $region38: #{tpu_custom_call.1} parent=27 // pred_check_branch
          %209 = sbr.rel (%p207) target = $region40
        $region39: #{tpu_custom_call.1} parent=27 // pred_region
          %s211 = ssub.s32 128, 128
          %212 = vsyncadd %s203, %s211
          %s213 = smul.addr %s20, 128
          %s214 = scalar_lea.hbm %s2, %s213
          %s216 = sshll.u32 %s206, 4
          %s217 = int_to_ptr.vmem [resolvable:$true] %s216
          %219 = dma.vmem_to_hbm [thread:$0]  %s217, 128, %s214, %s203
        $region40: #{tpu_custom_call.1} parent=27 // pred_fallthru
          _
      $region28: #{tpu_custom_call.1} parent=5 // pred_fallthru
        _
      %p220 = scmp.le.s32.totalorder 2, %s15
      // Predicated region
      $region41: #{tpu_custom_call.1} parent=5 // pred_check
        %p221 = pneg %p220
      $region42: #{tpu_custom_call.1} parent=5 // pred_check_branch
        %223 = sbr.rel (%p221) target = $region44
      $region43: #{tpu_custom_call.1} parent=5 // pred_region
        %s224 = ssub.s32 %s15, 2
        // Predicated region
        $region45: #{tpu_custom_call.1} parent=43 // pred_check
          %p225 = pneg %p91
        $region46: #{tpu_custom_call.1} parent=43 // pred_check_branch
          %227 = sbr.rel (%p225) target = $region48
        $region47: #{tpu_custom_call.1} parent=43 // pred_region
          %s228 = sand.u32 %s76, 1
          %s229 = scalar_lea.sflag [#allocation4], %s228
          %s230 = sand.u32 %s76, 1
          %s231 = smul.addr %s230, 8
          %s232 = scalar_lea.vmem [#allocation7], %s231
          %233 = dma.done %s229, 128
        $region48: #{tpu_custom_call.1} parent=43 // pred_fallthru
          _
      $region44: #{tpu_custom_call.1} parent=5 // pred_fallthru
        _
    $region6: #{tpu_custom_call.1} parent=1 // loop_footer
      %s19 = sadd.s32 1, %s15
    $region7: #{tpu_custom_call.1} parent=1 // loop_footer_branch
      %14 = sbr.rel target = $region3
    $region8: #{tpu_custom_call.1} parent=1 // loop_exit
      _
    %234 = vsyncpa [#allocation3], 1
    %s235 = scalar_lea.sflag [#allocation3], 1
    %236 = vsyncpa %s235, 1
    %237 = vsyncpa [#allocation4], 1
    %s238 = scalar_lea.sflag [#allocation4], 1
    %239 = vsyncpa %s238, 1
    %240 = vsyncpa [#allocation5], 1
    %s241 = scalar_lea.sflag [#allocation5], 1
    %242 = vsyncpa %s241, 1

</llo_original>
